<compile_context>
chip_gen: v6e
topology: v6e:2x2x1
jax: 0.10.0
libtpu: 0.0.40
codegen_flags: <defaults>
</compile_context>

<pallas_src>
import jax
import jax.numpy as jnp
from jax.experimental import pallas as pl
from jax.experimental.pallas import tpu as pltpu

_LANE_CHOICES = (512, 256, 128)       # lane-dense last dims (multiples of 128)
_TARGET_BLOCK_BYTES = 8 * 1024 * 1024  # ~8 MiB per block (per the review)


def _linear_shift_kernel(m_ref, b_ref, x_ref, o_ref):
    # m_ref, b_ref: (1,) float32 scalars in SMEM.
    # x_ref, o_ref: (block_rows, lane) tiles in VMEM.
    m = m_ref[0]
    b = b_ref[0]
    # Compute in f32 (f32 parameters, single rounding to output dtype); exact
    # for f32 inputs, better-than-bf16 accumulation for low-precision inputs.
    y = x_ref[...].astype(jnp.float32) * m + b
    o_ref[...] = y.astype(o_ref.dtype)


def linear_shift(x, m, b):
    """Pallas implementation of LinearShift.forward: m * x + b (scalar m, b)."""
    assert m.size == 1 and b.size == 1, "this kernel supports scalar (shape-[1]) m / b"
    orig_shape = x.shape
    dtype = x.dtype
    itemsize = jnp.dtype(dtype).itemsize
    packing = max(8, 32 // itemsize)  # sublane rows per vreg: 8 f32 / 16 bf16 / 32 int8
    total = int(x.size)

    # ---- choose a lane-dense 2-D presentation (rows, lane), preferring layouts
    #      that need NO padding and keep rows a multiple of the sublane packing.
    pad = 0
    lane = None
    if total % 128 == 0:
        for cand in _LANE_CHOICES:                      # prefer packing-aligned rows
            if total % cand == 0 and (total // cand) % packing == 0:
                lane = cand
                break
        if lane is None:
            for cand in _LANE_CHOICES:                  # any lane that divides total
                if total % cand == 0:
                    lane = cand
                    break
    if lane is None:
        # Rare fallback: trailing elements don't fill a 128-lane row.
        # TODO(synk): this path pays one pad + one slice copy; prefer shapes
        # whose element count is a multiple of 128.
        lane = 128
        pad = (-total) % 128
    padded_total = total + pad
    rows = padded_total // lane

    # ---- block size: ~8 MiB, packing-aligned; ensure >= 2 blocks when there is
    #      enough data so the "parallel" axis shards across both v7x TCs.
    desired_rows = max(packing, _TARGET_BLOCK_BYTES // (lane * itemsize))
    if rows <= desired_rows:
        if rows >= 2 * packing:
            half = (rows + 1) // 2
            block_rows = ((half + packing - 1) // packing) * packing
        else:
            block_rows = rows                            # single (full-extent) block
    else:
        block_rows = max(packing, (desired_rows // packing) * packing)
    num_blocks = pl.cdiv(rows, block_rows)

    if pad:
        x2 = jnp.pad(x.reshape(-1), (0, pad)).reshape(rows, lane)
    else:
        x2 = x.reshape(rows, lane)                       # pure layout change, no copy

    m1 = jnp.asarray(m, dtype=jnp.float32).reshape(1)
    b1 = jnp.asarray(b, dtype=jnp.float32).reshape(1)

    block_bytes = block_rows * lane * itemsize
    # double-buffered (x2) x (in + out) working set + a few MiB headroom.
    vmem_limit = min(100 * 1024 * 1024, 4 * block_bytes + (4 << 20))

    out2 = pl.pallas_call(
        _linear_shift_kernel,
        out_shape=jax.ShapeDtypeStruct((rows, lane), dtype),
        grid=(num_blocks,),
        in_specs=[
            pl.BlockSpec(memory_space=pltpu.MemorySpace.SMEM),    # m (scalar)
            pl.BlockSpec(memory_space=pltpu.MemorySpace.SMEM),    # b (scalar)
            pl.BlockSpec((block_rows, lane), lambda i: (i, 0)),   # x tile
        ],
        out_specs=pl.BlockSpec((block_rows, lane), lambda i: (i, 0)),
        compiler_params=pltpu.CompilerParams(
            dimension_semantics=("parallel",),
            vmem_limit_bytes=vmem_limit,
        ),
        cost_estimate=pl.CostEstimate(
            flops=2 * total,
            transcendentals=0,
            bytes_accessed=2 * total * itemsize,
        ),
    )(m1, b1, x2)

    if pad:
        return out2.reshape(-1)[:total].reshape(orig_shape)
    return out2.reshape(orig_shape)


def _reference_linear_shift(x, m, b):
    """Pure-jnp transcription of the PyTorch module, for verification."""
    return m.reshape(1) * x + b.reshape(1)


if __name__ == "__main__":
    key = jax.random.PRNGKey(0)
    kx, km, kb, kx2 = jax.random.split(key, 4)

    # Shapes consistent with the module: x is arbitrary, m and b are shape-[1] params.
    x = jax.random.normal(kx, (2, 4, 16, 16), dtype=jnp.float32)
    m = 1.0 + 0.5 * jax.random.normal(km, (1,), dtype=jnp.float32)  # non-trivial scale
    b = 0.25 * jax.random.normal(kb, (1,), dtype=jnp.float32)       # non-trivial shift

    out = jax.block_until_ready(linear_shift(x, m, b))
    ref = _reference_linear_shift(x, m, b)
    assert out.shape == ref.shape, (out.shape, ref.shape)
    assert out.dtype == ref.dtype, (out.dtype, ref.dtype)
    assert bool(jnp.allclose(out, ref, atol=1e-6, rtol=1e-6)), "mismatch vs reference"

    # Second case exercising the multi-block (megacore-shardable) path.
    x_big = jax.random.normal(kx2, (4, 8, 32, 32), dtype=jnp.float32)
    out_big = jax.block_until_ready(linear_shift(x_big, m, b))
    ref_big = _reference_linear_shift(x_big, m, b)
    assert out_big.shape == ref_big.shape
    assert bool(jnp.allclose(out_big, ref_big, atol=1e-6, rtol=1e-6)), "mismatch (big)"

    print("KERNEL_OK")
</pallas_src>

<mosaic_0001>
module attributes {stable_mosaic.version = 11 : i64} {
  func.func @_linear_shift_kernel(%arg0: i32, %arg1: memref<1xf32, #tpu.memory_space<smem>>, %arg2: memref<1xf32, #tpu.memory_space<smem>>, %arg3: memref<8x256xf32, #tpu.memory_space<vmem>>, %arg4: memref<8x256xf32, #tpu.memory_space<vmem>>) attributes {dimension_semantics = [#tpu.dimension_semantics<parallel>], iteration_bounds = array<i64: 1>, scalar_prefetch = 0 : i64, scratch_operands = 0 : i64, tpu.core_type = #tpu.core_type<tc>, window_params = [{transform_indices = @transform_0, window_bounds = array<i64: 1>}, {transform_indices = @transform_1, window_bounds = array<i64: 1>}, {transform_indices = @transform_2, window_bounds = array<i64: 8, 256>}, {transform_indices = @transform_3, window_bounds = array<i64: 8, 256>}]} {
    %c0 = arith.constant 0 : index
    %0 = memref.load %arg1[%c0] : memref<1xf32, #tpu.memory_space<smem>>
    %c0_0 = arith.constant 0 : index
    %1 = memref.load %arg2[%c0_0] : memref<1xf32, #tpu.memory_space<smem>>
    %c0_1 = arith.constant 0 : index
    %c0_2 = arith.constant 0 : index
    %2 = vector.load %arg3[%c0_1, %c0_2] : memref<8x256xf32, #tpu.memory_space<vmem>>, vector<8x256xf32>
    %3 = vector.broadcast %0 : f32 to vector<8x256xf32>
    %4 = arith.mulf %2, %3 : vector<8x256xf32>
    %5 = vector.broadcast %1 : f32 to vector<8x256xf32>
    %6 = arith.addf %4, %5 : vector<8x256xf32>
    %c0_3 = arith.constant 0 : index
    %c0_4 = arith.constant 0 : index
    %7 = vector.load %arg4[%c0_3, %c0_4] : memref<8x256xf32, #tpu.memory_space<vmem>>, vector<8x256xf32>
    tpu.vector_store %arg4[%c0_3, %c0_4], %6 {strides = array<i32>} : memref<8x256xf32, #tpu.memory_space<vmem>>, vector<8x256xf32>,
    return
  }
  func.func @transform_0(%arg0: i32) -> i32 {
    %c0_i32 = arith.constant 0 : i32
    %c0_i32_0 = arith.constant 0 : i32
    return %c0_i32 : i32
  }
  func.func @transform_1(%arg0: i32) -> i32 {
    %c0_i32 = arith.constant 0 : i32
    %c0_i32_0 = arith.constant 0 : i32
    return %c0_i32 : i32
  }
  func.func @transform_2(%arg0: i32) -> (i32, i32) {
    %c0_i32 = arith.constant 0 : i32
    %c0_i32_0 = arith.constant 0 : i32
    return %arg0, %c0_i32 : i32, i32
  }
  func.func @transform_3(%arg0: i32) -> (i32, i32) {
    %c0_i32 = arith.constant 0 : i32
    %c0_i32_0 = arith.constant 0 : i32
    return %arg0, %c0_i32 : i32, i32
  }
}

</mosaic_0001>

<llo_original>
// kernel: tpu_custom_call.1
$region0: #{tpu_custom_call.1}
  #allocation0 [shape = 'u32[]', space=smem, size = 0x4, offset = 0x4, fixed_abs, tag = 'smem constant byte address 0x4 - core index']
  #allocation1 [shape = 'u32[144,128]{1,0:T(1,128)}', space=vmem, size = 0x12000, scoped, tag = 'internal scratch']
  #allocation2 [shape = 'f32[1]{0:T(128)S(6)}', space=smem, size = 0x200, scoped, tag = 'scoped memory for tpu_custom_call.1']
  #allocation3 [shape = 'f32[1]{0:T(128)S(6)}', space=smem, size = 0x200, scoped, tag = 'scoped memory for tpu_custom_call.1']
  %s0 = inlined_call_operand.<no memory space> [shape: f32[1], index: 0, kind: input, shape index: {}]
  %s1 = inlined_call_operand.<no memory space> [shape: f32[1], index: 1, kind: input, shape index: {}]
  %s2 = inlined_call_operand.hbm [shape: f32[8,256], index: 2, kind: input, shape index: {}]
  %s3 = inlined_call_operand.hbm [shape: f32[8,256], index: 3, kind: output, shape index: {}]
  %s4 = sld [smem:[#allocation0]]
  $region26: #{tpu_custom_call.1} parent=0
    _
  %s6 = ssub.s32 1, %s4
  %s7 = scalar_select 0, %s6, %s4
  %8 = sst [smem:[#allocation2]] %s0
  %9 = sst [smem:[#allocation3]] %s1
  $region1: #{tpu_custom_call.1} parent=0
    #allocation4 [shape = 'u8[8192]{0}', space=vmem, size = 0x2000, scoped, tag = 'input window, operand 2, single buffered']
    #allocation5 [shape = 's32[1]{0}', space=sflag, size = 0x4, scoped, tag = 'scoped memory for tpu_custom_call.1']
    #allocation6 [shape = 's32[1]{0}', space=sflag, size = 0x4, scoped, tag = 'scoped memory for tpu_custom_call.1']
    #allocation7 [shape = 'u8[8192]{0}', space=vmem, size = 0x2000, scoped, tag = 'output window, operand 0, single buffered']
    %10 = vsyncpa [#allocation5], 0
    %11 = vsyncpa [#allocation6], 0
    // Predicated region
    $region2: #{tpu_custom_call.1} parent=1 // pred_check
      _
    $region3: #{tpu_custom_call.1} parent=1 // pred_check_branch
      %13 = sbr.rel (0) target = $region5
    $region4: #{tpu_custom_call.1} parent=1 // pred_region
      _
    $region5: #{tpu_custom_call.1} parent=1 // pred_fallthru
      _
    // Predicated region
    $region6: #{tpu_custom_call.1} parent=1 // pred_check
      _
    $region7: #{tpu_custom_call.1} parent=1 // pred_check_branch
      %15 = sbr.rel (0) target = $region9
    $region8: #{tpu_custom_call.1} parent=1 // pred_region
      _
    $region9: #{tpu_custom_call.1} parent=1 // pred_fallthru
      _
    // Predicated region
    $region10: #{tpu_custom_call.1} parent=1 // pred_check
      _
    $region11: #{tpu_custom_call.1} parent=1 // pred_check_branch
      %17 = sbr.rel (0) target = $region13
    $region12: #{tpu_custom_call.1} parent=1 // pred_region
      %s19 = ssub.s32 256, 256
      %20 = vsyncadd [#allocation5], %s19
      %s22 = sshll.u32 [#allocation4], 4
      %s23 = int_to_ptr.vmem [resolvable:$true] %s22
      %25 = dma.hbm_to_vmem [thread:$0]  %s2, 256, %s23, [#allocation5]
    $region13: #{tpu_custom_call.1} parent=1 // pred_fallthru
      _
    // Predicated region
    $region14: #{tpu_custom_call.1} parent=1 // pred_check
      _
    $region15: #{tpu_custom_call.1} parent=1 // pred_check_branch
      %27 = sbr.rel (0) target = $region17
    $region16: #{tpu_custom_call.1} parent=1 // pred_region
      %28 = dma.done [#allocation5], 256
    $region17: #{tpu_custom_call.1} parent=1 // pred_fallthru
      _
    %s29 = sld [smem:[#allocation2]]
    %s30 = sld [smem:[#allocation3]]
    %v31 = vld [vmem:[#allocation4] sm:$0xff]
    %v32 = vld [vmem:[#allocation4 + $0x8] sm:$0xff]
    %v33 = vstv %s29
    %v34 = vmul.f32 %v31, %v33
    %v35 = vmul.f32 %v32, %v33
    %v36 = vstv %s30
    %v37 = vadd.f32 %v34, %v36
    %v38 = vadd.f32 %v35, %v36
    %39 = vst [vmem:[#allocation7] sm:$0xff] %v37
    %40 = vst [vmem:[#allocation7 + $0x8] sm:$0xff] %v38
    // Predicated region
    $region18: #{tpu_custom_call.1} parent=1 // pred_check
      _
    $region19: #{tpu_custom_call.1} parent=1 // pred_check_branch
      %42 = sbr.rel (0) target = $region21
    $region20: #{tpu_custom_call.1} parent=1 // pred_region
      %s44 = ssub.s32 256, 256
      %45 = vsyncadd [#allocation6], %s44
      %s47 = sshll.u32 [#allocation7], 4
      %s48 = int_to_ptr.vmem [resolvable:$true] %s47
      %50 = dma.vmem_to_hbm [thread:$0]  %s48, 256, %s3, [#allocation6]
    $region21: #{tpu_custom_call.1} parent=1 // pred_fallthru
      _
    // Predicated region
    $region22: #{tpu_custom_call.1} parent=1 // pred_check
      _
    $region23: #{tpu_custom_call.1} parent=1 // pred_check_branch
      %52 = sbr.rel (0) target = $region25
    $region24: #{tpu_custom_call.1} parent=1 // pred_region
      %53 = dma.done [#allocation6], 256
    $region25: #{tpu_custom_call.1} parent=1 // pred_fallthru
      _
    %54 = vsyncpa [#allocation5], 1
    %55 = vsyncpa [#allocation6], 1

</llo_original>
